<compile_context>
chip_gen: v7x
topology: tpu7x:2x2x1
jax: 0.10.0
libtpu: 0.0.40
codegen_flags: <defaults>
</compile_context>

<pallas_src>
import functools

import jax
import jax.numpy as jnp
from jax.experimental import pallas as pl
from jax.experimental.pallas import tpu as pltpu


def _tmha_kernel(*refs, heads, seq_len, shared, compute_dtype):
    if shared:
        xq_ref, wqkv_ref, mask_ref, wo_ref, bo_ref, o_ref = refs
    else:
        xq_ref, xk_ref, xv_ref, wqkv_ref, mask_ref, wo_ref, bo_ref, o_ref = refs

    R, C = xq_ref.shape              # R = bn_tile * T rows, C = embed lanes
    T = seq_len
    bn = R // T                      # number of (batch, node) slices in this tile
    HT = heads * T
    cd = compute_dtype

    # --- fused Q/K/V projection (scale already folded into the Q columns) -------
    wqkv = wqkv_ref[...]             # [C, 3C]
    if shared:
        qkv = jnp.dot(xq_ref[...], wqkv, preferred_element_type=jnp.float32)
        q2, k2, v2 = qkv[:, :C], qkv[:, C:2 * C], qkv[:, 2 * C:]
    else:
        q2 = jnp.dot(xq_ref[...], wqkv[:, :C], preferred_element_type=jnp.float32)
        k2 = jnp.dot(xk_ref[...], wqkv[:, C:2 * C], preferred_element_type=jnp.float32)
        v2 = jnp.dot(xv_ref[...], wqkv[:, 2 * C:], preferred_element_type=jnp.float32)

    # [R, C] -> [bn, T, C]; with T == 8 this regroup is layout-preserving.
    q3 = q2.astype(cd).reshape(bn, T, C)
    k3 = k2.astype(cd).reshape(bn, T, C)
    v3 = v2.astype(cd).reshape(bn, T, C)

    # --- head-block-diagonal K / V ----------------------------------------------
    # Row r = h*T + s of k_bd/v_bd carries step s masked to head h's lane block, so
    # ONE batched matmul pair covers every head at once (no per-head loop/slices).
    mask = mask_ref[...]                                    # [HT, C], 0/1
    k_bd = jnp.concatenate([k3] * heads, axis=1) * mask     # [bn, HT, C]
    v_bd = jnp.concatenate([v3] * heads, axis=1) * mask     # [bn, HT, C]

    # Scores for every head; heads laid out as lane groups of T along the last axis.
    s = jnp.einsum('btc,brc->btr', q3, k_bd,
                   preferred_element_type=jnp.float32)      # [bn, T, HT]

    # Softmax (f32): one per-(slice, t) max over all heads is a constant shift per
    # head group, so it is a valid stabiliser and avoids a grouped-max relayout.
    m = jnp.max(s, axis=-1, keepdims=True)
    e = jnp.exp(s - m).astype(cd)                           # [bn, T, HT]

    # Unnormalised context + per-head denominators.  The same 0/1 mask matrix used
    # for the block-diagonal packing also broadcasts each head's sum back onto its
    # lane block, so a single multiply normalises every head.
    ctx_raw = jnp.einsum('btr,brc->btc', e, v_bd,
                         preferred_element_type=jnp.float32)            # [bn, T, C]
    denom = jnp.dot(e.reshape(R, HT), mask,
                    preferred_element_type=jnp.float32)                 # [R, C]
    ctx = (ctx_raw.reshape(R, C) *
           pl.reciprocal(denom, approx=True)).astype(cd)                # [R, C]

    # fc_out: Linear(H*D -> C) with bias (bias added in f32).
    out = jnp.dot(ctx, wo_ref[...], preferred_element_type=jnp.float32) + bo_ref[...]
    o_ref[...] = out.astype(o_ref.dtype)


def tmha_forward(input_q, input_k, input_v, params, *, heads,
                 bn_tile=256, compute_dtype=jnp.bfloat16):
    """input_*: [B, N, T, C].  Returns [B, N, T, C] float32."""
    B, N, T, C = input_q.shape
    D = C // heads
    assert D * heads == C, "embed_size must be divisible by heads"
    HT = heads * T
    BN = B * N

    wq, wk, wv, wo, bo = params          # wq/wk/wv/wo: [C, C] ([in, out]), bo: [1, C]
    scale = 1.0 / float(D) ** 0.5
    wqkv = jnp.concatenate([wq * scale, wk, wv], axis=1)              # [C, 3C]
    mask = (jnp.arange(HT)[:, None] // T ==
            jnp.arange(C)[None, :] // D).astype(compute_dtype)        # [HT, C]

    # Single-input fast path for plain self-attention (1 activation DMA, fused QKV).
    # NOTE: inside a larger jit the "same" tensor is often a different tracer, so
    # this is a perf switch only, never a correctness one.
    shared = (input_k is input_q) and (input_v is input_q)

    # Tile sizing: big tiles amortise the ~0.35us/step pipeline overhead; cap so the
    # grid keeps >= 2 steps (v7x megacore shards the "parallel" axis across 2 TCs).
    bn_tile = max(1, min(bn_tile, BN))
    if BN >= 2:
        bn_tile = min(bn_tile, pl.cdiv(BN, 2))
    grid_len = pl.cdiv(BN, bn_tile)
    if grid_len > 1 and (bn_tile * T) % 8 != 0:
        bn_tile, grid_len = BN, 1        # keep the block's second-minor dim legal
    rows_blk = bn_tile * T

    acts = [input_q.reshape(BN * T, C)]
    if not shared:
        acts += [input_k.reshape(BN * T, C), input_v.reshape(BN * T, C)]
    acts = [a.astype(compute_dtype) for a in acts]      # halves activation DMA in bf16
    wqkv = wqkv.astype(compute_dtype)
    wo_c = wo.astype(compute_dtype)
    bo_f = bo.reshape(1, C).astype(jnp.float32)

    kernel = functools.partial(_tmha_kernel, heads=heads, seq_len=T,
                               shared=shared, compute_dtype=compute_dtype)

    x_spec = pl.BlockSpec((rows_blk, C), lambda i: (i, 0))
    in_specs = [x_spec] * len(acts) + [
        pl.BlockSpec((C, 3 * C), lambda i: (0, 0)),     # fused QKV weight
        pl.BlockSpec((HT, C), lambda i: (0, 0)),        # head mask / denom matrix
        pl.BlockSpec((C, C), lambda i: (0, 0)),         # fc_out weight
        pl.BlockSpec((1, C), lambda i: (0, 0)),         # fc_out bias (f32)
    ]

    out = pl.pallas_call(
        kernel,
        out_shape=jax.ShapeDtypeStruct((BN * T, C), jnp.float32),
        grid_spec=pltpu.PrefetchScalarGridSpec(
            num_scalar_prefetch=0,
            grid=(grid_len,),
            in_specs=in_specs,
            out_specs=x_spec),
        compiler_params=pltpu.CompilerParams(
            dimension_semantics=("parallel",),
            vmem_limit_bytes=32 * 1024 * 1024),
    )(*acts, wqkv, mask, wo_c, bo_f)

    return out.reshape(B, N, T, C)


def tmha_reference(input_q, input_k, input_v, params, *, heads):
    """Pure-JAX reference mirroring the PyTorch forward pass."""
    B, N, T, C = input_q.shape
    D = C // heads
    wq, wk, wv, wo, bo = params

    def proj(x, w):
        y = jnp.einsum('bntc,cd->bntd', x, w)
        return y.reshape(B, N, T, heads, D).transpose(0, 3, 1, 2, 4)  # [B,H,N,T,D]

    Q = proj(input_q, wq)
    K = proj(input_k, wk)
    V = proj(input_v, wv)
    scores = jnp.einsum('bhntd,bhnsd->bhnts', Q, K) / jnp.sqrt(jnp.float32(D))
    attn = jax.nn.softmax(scores, axis=-1)
    ctx = jnp.einsum('bhnts,bhnsd->bhntd', attn, V)
    ctx = ctx.transpose(0, 2, 3, 1, 4).reshape(B, N, T, heads * D)
    return jnp.einsum('bntc,cd->bntd', ctx, wo) + bo[0]


if __name__ == "__main__":
    # Small, module-consistent shapes: [B, N, T, C] with C = embed_size.
    B, N, T = 2, 4, 8
    embed_size, heads = 32, 4

    key = jax.random.PRNGKey(0)
    kq, kk, kv, kwq, kwk, kwv, kwo, kbo = jax.random.split(key, 8)

    input_q = jax.random.normal(kq, (B, N, T, embed_size), dtype=jnp.float32)
    input_k = jax.random.normal(kk, (B, N, T, embed_size), dtype=jnp.float32)
    input_v = jax.random.normal(kv, (B, N, T, embed_size), dtype=jnp.float32)

    s = 1.0 / jnp.sqrt(jnp.float32(embed_size))
    wq = jax.random.normal(kwq, (embed_size, embed_size), dtype=jnp.float32) * s
    wk = jax.random.normal(kwk, (embed_size, embed_size), dtype=jnp.float32) * s
    wv = jax.random.normal(kwv, (embed_size, embed_size), dtype=jnp.float32) * s
    wo = jax.random.normal(kwo, (embed_size, embed_size), dtype=jnp.float32) * s
    bo = jax.random.normal(kbo, (1, embed_size), dtype=jnp.float32) * s
    params = (wq, wk, wv, wo, bo)

    ref = tmha_reference(input_q, input_k, input_v, params, heads=heads)
    ref_sh = tmha_reference(input_q, input_q, input_q, params, heads=heads)

    # 1) Default path: bf16 MXU operands (v6e / v7x fast path), distinct Q/K/V.
    out_bf = jax.block_until_ready(
        tmha_forward(input_q, input_k, input_v, params, heads=heads))
    assert out_bf.shape == (B, N, T, embed_size)
    assert jnp.allclose(out_bf, ref, atol=1e-1, rtol=1e-1), (
        f"bf16 path max abs err {jnp.max(jnp.abs(out_bf - ref))}")

    # 2) Shared self-attention path: one activation stream DMA'd, fused QKV matmul.
    out_sh = jax.block_until_ready(
        tmha_forward(input_q, input_q, input_q, params, heads=heads))
    assert jnp.allclose(out_sh, ref_sh, atol=1e-1, rtol=1e-1), (
        f"shared path max abs err {jnp.max(jnp.abs(out_sh - ref_sh))}")

    # 3) f32 compute path (v5e precision-sensitive callers); approx reciprocal in
    #    the softmax denominator -> slightly relaxed tolerance.
    out_f32 = jax.block_until_ready(
        tmha_forward(input_q, input_k, input_v, params, heads=heads,
                     compute_dtype=jnp.float32))
    assert jnp.allclose(out_f32, ref, atol=5e-3, rtol=5e-3), (
        f"f32 path max abs err {jnp.max(jnp.abs(out_f32 - ref))}")

    print("KERNEL_OK")
</pallas_src>

<mosaic_0001>
module attributes {stable_mosaic.version = 11 : i64} {
  func.func @_tmha_kernel(%arg0: i32, %arg1: memref<32x32xbf16, #tpu.memory_space<vmem>>, %arg2: memref<32x32xbf16, #tpu.memory_space<vmem>>, %arg3: memref<32x32xbf16, #tpu.memory_space<vmem>>, %arg4: memref<32x96xbf16, #tpu.memory_space<vmem>>, %arg5: memref<32x32xbf16, #tpu.memory_space<vmem>>, %arg6: memref<32x32xbf16, #tpu.memory_space<vmem>>, %arg7: memref<1x32xf32, #tpu.memory_space<vmem>>, %arg8: memref<32x32xf32, #tpu.memory_space<vmem>>) attributes {dimension_semantics = [#tpu.dimension_semantics<parallel>], iteration_bounds = array<i64: 2>, scalar_prefetch = 0 : i64, scratch_operands = 0 : i64, tpu.core_type = #tpu.core_type<tc>, window_params = [{transform_indices = @transform_0, window_bounds = array<i64: 32, 32>}, {transform_indices = @transform_1, window_bounds = array<i64: 32, 32>}, {transform_indices = @transform_2, window_bounds = array<i64: 32, 32>}, {pipeline_mode = #tpu.pipeline_mode<synchronous>, transform_indices = @transform_3, window_bounds = array<i64: 32, 96>}, {pipeline_mode = #tpu.pipeline_mode<synchronous>, transform_indices = @transform_4, window_bounds = array<i64: 32, 32>}, {pipeline_mode = #tpu.pipeline_mode<synchronous>, transform_indices = @transform_5, window_bounds = array<i64: 32, 32>}, {pipeline_mode = #tpu.pipeline_mode<synchronous>, transform_indices = @transform_6, window_bounds = array<i64: 1, 32>}, {transform_indices = @transform_7, window_bounds = array<i64: 32, 32>}]} {
    %c0 = arith.constant 0 : index
    %c0_0 = arith.constant 0 : index
    %0 = vector.load %arg4[%c0, %c0_0] : memref<32x96xbf16, #tpu.memory_space<vmem>>, vector<32x96xbf16>
    %c0_1 = arith.constant 0 : index
    %c0_2 = arith.constant 0 : index
    %1 = vector.load %arg1[%c0_1, %c0_2] : memref<32x32xbf16, #tpu.memory_space<vmem>>, vector<32x32xbf16>
    %2 = vector.extract_strided_slice %0 {offsets = [0, 0], sizes = [32, 32], strides = [1, 1]} : vector<32x96xbf16> to vector<32x32xbf16>
    %cst = arith.constant dense<0.000000e+00> : vector<32x32xf32>
    %3 = tpu.matmul %1, %2, %cst {dimension_numbers = #tpu.dot_dimension_numbers<[1], [0], [0], [1], [0, 0, 1, 1], [], []>} : vector<32x32xbf16>, vector<32x32xbf16>, vector<32x32xf32> -> vector<32x32xf32>
    %c0_3 = arith.constant 0 : index
    %c0_4 = arith.constant 0 : index
    %4 = vector.load %arg2[%c0_3, %c0_4] : memref<32x32xbf16, #tpu.memory_space<vmem>>, vector<32x32xbf16>
    %5 = vector.extract_strided_slice %0 {offsets = [0, 32], sizes = [32, 32], strides = [1, 1]} : vector<32x96xbf16> to vector<32x32xbf16>
    %cst_5 = arith.constant dense<0.000000e+00> : vector<32x32xf32>
    %6 = tpu.matmul %4, %5, %cst_5 {dimension_numbers = #tpu.dot_dimension_numbers<[1], [0], [0], [1], [0, 0, 1, 1], [], []>} : vector<32x32xbf16>, vector<32x32xbf16>, vector<32x32xf32> -> vector<32x32xf32>
    %c0_6 = arith.constant 0 : index
    %c0_7 = arith.constant 0 : index
    %7 = vector.load %arg3[%c0_6, %c0_7] : memref<32x32xbf16, #tpu.memory_space<vmem>>, vector<32x32xbf16>
    %8 = vector.extract_strided_slice %0 {offsets = [0, 64], sizes = [32, 32], strides = [1, 1]} : vector<32x96xbf16> to vector<32x32xbf16>
    %cst_8 = arith.constant dense<0.000000e+00> : vector<32x32xf32>
    %9 = tpu.matmul %7, %8, %cst_8 {dimension_numbers = #tpu.dot_dimension_numbers<[1], [0], [0], [1], [0, 0, 1, 1], [], []>} : vector<32x32xbf16>, vector<32x32xbf16>, vector<32x32xf32> -> vector<32x32xf32>
    %10 = arith.truncf %3 : vector<32x32xf32> to vector<32x32xbf16>
    %11 = vector.shape_cast %10 : vector<32x32xbf16> to vector<4x8x32xbf16>
    %12 = arith.truncf %6 : vector<32x32xf32> to vector<32x32xbf16>
    %13 = vector.shape_cast %12 : vector<32x32xbf16> to vector<4x8x32xbf16>
    %14 = arith.truncf %9 : vector<32x32xf32> to vector<32x32xbf16>
    %15 = vector.shape_cast %14 : vector<32x32xbf16> to vector<4x8x32xbf16>
    %c0_9 = arith.constant 0 : index
    %c0_10 = arith.constant 0 : index
    %16 = vector.load %arg5[%c0_9, %c0_10] : memref<32x32xbf16, #tpu.memory_space<vmem>>, vector<32x32xbf16>
    %17 = tpu.concatenate %13, %13, %13, %13 in 1 : vector<4x8x32xbf16>, vector<4x8x32xbf16>, vector<4x8x32xbf16>, vector<4x8x32xbf16> -> vector<4x32x32xbf16>
    %18 = vector.shape_cast %16 : vector<32x32xbf16> to vector<1x32x32xbf16>
    %19 = vector.broadcast %18 : vector<1x32x32xbf16> to vector<4x32x32xbf16>
    %20 = arith.mulf %17, %19 : vector<4x32x32xbf16>
    %21 = tpu.concatenate %15, %15, %15, %15 in 1 : vector<4x8x32xbf16>, vector<4x8x32xbf16>, vector<4x8x32xbf16>, vector<4x8x32xbf16> -> vector<4x32x32xbf16>
    %22 = vector.shape_cast %16 : vector<32x32xbf16> to vector<1x32x32xbf16>
    %23 = vector.broadcast %22 : vector<1x32x32xbf16> to vector<4x32x32xbf16>
    %24 = arith.mulf %21, %23 : vector<4x32x32xbf16>
    "tpu.trace_start"() <{level = 10 : i32, message = "btc,brc->btr"}> : () -> ()
    %cst_11 = arith.constant dense<0.000000e+00> : vector<4x8x32xf32>
    %25 = tpu.matmul %11, %20, %cst_11 {dimension_numbers = #tpu.dot_dimension_numbers<[2], [2], [1], [1], [0, 0, 0, 1, 1, 1], [0], [0]>} : vector<4x8x32xbf16>, vector<4x32x32xbf16>, vector<4x8x32xf32> -> vector<4x8x32xf32>
    "tpu.trace_stop"() : () -> ()
    %cst_12 = arith.constant dense<0xFF800000> : vector<4x8xf32>
    %26 = vector.multi_reduction <maximumf>, %25, %cst_12 [2] : vector<4x8x32xf32> to vector<4x8xf32>
    %27 = vector.shape_cast %26 : vector<4x8xf32> to vector<4x8x1xf32>
    %28 = vector.broadcast %27 : vector<4x8x1xf32> to vector<4x8x32xf32>
    %29 = arith.subf %25, %28 : vector<4x8x32xf32>
    %30 = math.exp %29 : vector<4x8x32xf32>
    %31 = arith.truncf %30 : vector<4x8x32xf32> to vector<4x8x32xbf16>
    "tpu.trace_start"() <{level = 10 : i32, message = "btr,brc->btc"}> : () -> ()
    %cst_13 = arith.constant dense<0.000000e+00> : vector<4x8x32xf32>
    %32 = tpu.matmul %31, %24, %cst_13 {dimension_numbers = #tpu.dot_dimension_numbers<[2], [1], [1], [2], [0, 0, 0, 1, 1, 2], [0], [0]>} : vector<4x8x32xbf16>, vector<4x32x32xbf16>, vector<4x8x32xf32> -> vector<4x8x32xf32>
    "tpu.trace_stop"() : () -> ()
    %33 = vector.shape_cast %31 : vector<4x8x32xbf16> to vector<32x32xbf16>
    %cst_14 = arith.constant dense<0.000000e+00> : vector<32x32xf32>
    %34 = tpu.matmul %33, %16, %cst_14 {dimension_numbers = #tpu.dot_dimension_numbers<[1], [0], [0], [1], [0, 0, 1, 1], [], []>} : vector<32x32xbf16>, vector<32x32xbf16>, vector<32x32xf32> -> vector<32x32xf32>
    %35 = vector.shape_cast %32 : vector<4x8x32xf32> to vector<32x32xf32>
    %36 = tpu.reciprocal %34 {approx = true} : vector<32x32xf32> -> vector<32x32xf32>
    %37 = arith.mulf %35, %36 : vector<32x32xf32>
    %38 = arith.truncf %37 : vector<32x32xf32> to vector<32x32xbf16>
    %c0_15 = arith.constant 0 : index
    %c0_16 = arith.constant 0 : index
    %39 = vector.load %arg6[%c0_15, %c0_16] : memref<32x32xbf16, #tpu.memory_space<vmem>>, vector<32x32xbf16>
    %cst_17 = arith.constant dense<0.000000e+00> : vector<32x32xf32>
    %40 = tpu.matmul %38, %39, %cst_17 {dimension_numbers = #tpu.dot_dimension_numbers<[1], [0], [0], [1], [0, 0, 1, 1], [], []>} : vector<32x32xbf16>, vector<32x32xbf16>, vector<32x32xf32> -> vector<32x32xf32>
    %c0_18 = arith.constant 0 : index
    %c0_19 = arith.constant 0 : index
    %41 = vector.load %arg7[%c0_18, %c0_19] : memref<1x32xf32, #tpu.memory_space<vmem>>, vector<1x32xf32>
    %42 = vector.broadcast %41 : vector<1x32xf32> to vector<32x32xf32>
    %43 = arith.addf %40, %42 : vector<32x32xf32>
    %c0_20 = arith.constant 0 : index
    %c0_21 = arith.constant 0 : index
    %44 = vector.load %arg8[%c0_20, %c0_21] : memref<32x32xf32, #tpu.memory_space<vmem>>, vector<32x32xf32>
    tpu.vector_store %arg8[%c0_20, %c0_21], %43 {strides = array<i32>} : memref<32x32xf32, #tpu.memory_space<vmem>>, vector<32x32xf32>,
    return
  }
  func.func @transform_0(%arg0: i32) -> (i32, i32) {
    %c0_i32 = arith.constant 0 : i32
    %c0_i32_0 = arith.constant 0 : i32
    return %arg0, %c0_i32 : i32, i32
  }
  func.func @transform_1(%arg0: i32) -> (i32, i32) {
    %c0_i32 = arith.constant 0 : i32
    %c0_i32_0 = arith.constant 0 : i32
    return %arg0, %c0_i32 : i32, i32
  }
  func.func @transform_2(%arg0: i32) -> (i32, i32) {
    %c0_i32 = arith.constant 0 : i32
    %c0_i32_0 = arith.constant 0 : i32
    return %arg0, %c0_i32 : i32, i32
  }
  func.func @transform_3(%arg0: i32) -> (i32, i32) {
    %c0_i32 = arith.constant 0 : i32
    %c0_i32_0 = arith.constant 0 : i32
    %c0_i32_1 = arith.constant 0 : i32
    return %c0_i32, %c0_i32_0 : i32, i32
  }
  func.func @transform_4(%arg0: i32) -> (i32, i32) {
    %c0_i32 = arith.constant 0 : i32
    %c0_i32_0 = arith.constant 0 : i32
    %c0_i32_1 = arith.constant 0 : i32
    return %c0_i32, %c0_i32_0 : i32, i32
  }
  func.func @transform_5(%arg0: i32) -> (i32, i32) {
    %c0_i32 = arith.constant 0 : i32
    %c0_i32_0 = arith.constant 0 : i32
    %c0_i32_1 = arith.constant 0 : i32
    return %c0_i32, %c0_i32_0 : i32, i32
  }
  func.func @transform_6(%arg0: i32) -> (i32, i32) {
    %c0_i32 = arith.constant 0 : i32
    %c0_i32_0 = arith.constant 0 : i32
    %c0_i32_1 = arith.constant 0 : i32
    return %c0_i32, %c0_i32_0 : i32, i32
  }
  func.func @transform_7(%arg0: i32) -> (i32, i32) {
    %c0_i32 = arith.constant 0 : i32
    %c0_i32_0 = arith.constant 0 : i32
    return %arg0, %c0_i32 : i32, i32
  }
}

</mosaic_0001>

<llo_original>
// kernel: tpu_custom_call.1
$region0: #{tpu_custom_call.1}
  #allocation0 [shape = 'u32[]', space=smem, size = 0x4, offset = 0x4, fixed_abs, tag = 'smem constant byte address 0x4 - core index']
  #allocation1 [shape = 'u32[144,128]{1,0:T(1,128)}', space=vmem, size = 0x12000, scoped, tag = 'internal scratch']
  %s0 = inlined_call_operand.vmem [shape: bf16[64,32], index: 0, kind: input, shape index: {}]
  %s1 = inlined_call_operand.vmem [shape: bf16[64,32], index: 1, kind: input, shape index: {}]
  %s2 = inlined_call_operand.vmem [shape: bf16[64,32], index: 2, kind: input, shape index: {}]
  %s3 = inlined_call_operand.vmem [shape: bf16[32,96], index: 3, kind: input, shape index: {}]
  %s4 = inlined_call_operand.vmem [shape: bf16[32,32], index: 4, kind: input, shape index: {}]
  %s5 = inlined_call_operand.vmem [shape: bf16[32,32], index: 5, kind: input, shape index: {}]
  %s6 = inlined_call_operand.vmem [shape: f32[1,32], index: 6, kind: input, shape index: {}]
  %s7 = inlined_call_operand.vmem [shape: f32[64,32], index: 7, kind: output, shape index: {}]
  %s8 = sld [smem:[#allocation0]]
  $region61: #{tpu_custom_call.1} parent=0
    _
  %s10 = ssub.s32 1, %s8
  %s11 = scalar_select 0, %s10, %s8
  loop: start=0, step=1, limit=4
  $region2: #{tpu_custom_call.1} parent=0 // loop_pre_header
    _
  $region3: #{tpu_custom_call.1} parent=0 // loop_header
    %s13 = sphi 0, %s17
    %p14 = scmp.ge.s32.totalorder %s13, 4
    %s23 = sphi 0, %s25
    %s26 = sphi 0, %s23
    %s27 = sphi 0, %s26
    %s43 = sphi 0, %s27
    %s49 = sphi 0, %s51
    %s52 = sphi 0, %s49
    %s53 = sphi 0, %s52
    %s69 = sphi 0, %s53
    %s75 = sphi 0, %s77
    %s78 = sphi 0, %s75
    %s79 = sphi 0, %s78
    %s95 = sphi 0, %s79
    %s99 = sphi 0, %s99
    %s101 = sphi 0, %s99
    %s102 = sphi 0, %s101
    %s116 = sphi 0, %s102
    %s120 = sphi 0, %s120
    %s122 = sphi 0, %s120
    %s123 = sphi 0, %s122
    %s137 = sphi 0, %s123
    %s141 = sphi 0, %s141
    %s143 = sphi 0, %s141
    %s144 = sphi 0, %s143
    %s158 = sphi 0, %s144
    %s162 = sphi 0, %s162
    %s164 = sphi 0, %s162
    %s165 = sphi 0, %s164
    %s179 = sphi 0, %s165
    %s185 = sphi 0, %s187
    %s188 = sphi 0, %s185
    %s189 = sphi 0, %s188
    %s205 = sphi 0, %s189
  $region4: #{tpu_custom_call.1} parent=0 // loop_header_branch
    %16 = sbr.rel (%p14) target = $region8
  $region5: #{tpu_custom_call.1} parent=0 // loop_body
    %s18 = ssub.s32 %s13, 1
    %s19 = ssub.s32 %s13, 2
    %s20 = sadd.s32 %s13, 1
    %s21 = ssub.s32 %s13, %s20
    %p22 = scmp.eq.s32.totalorder %s21, 0
    %s24 = sadd.s32 %s23, 1
    %s25 = scalar_select %p22, %s23, %s24
    %p28 = pneg %p22
    %p29 = scmp.eq.s32.totalorder %s13, 1
    %p30 = por %p28, %p29
    %p31 = scmp.ne.s32.totalorder %s23, %s26
    %p32 = scmp.eq.s32.totalorder %s13, 0
    %p33 = por %p31, %p32
    %p34 = scmp.ne.s32.totalorder %s23, %s26
    %p35 = scmp.eq.s32.totalorder %s18, 1
    %p36 = por %p34, %p35
    %p37 = scmp.ne.s32.totalorder %s26, %s27
    %p38 = scmp.eq.s32.totalorder %s18, 0
    %p39 = por %p37, %p38
    %p40 = scmp.ne.s32.totalorder %s26, %s27
    %p41 = scmp.eq.s32.totalorder %s19, 1
    %p42 = por %p40, %p41
    %p44 = scmp.ne.s32.totalorder %s27, %s43
    %p45 = scmp.eq.s32.totalorder %s19, 0
    %p46 = por %p44, %p45
    %s47 = ssub.s32 %s13, %s20
    %p48 = scmp.eq.s32.totalorder %s47, 0
    %s50 = sadd.s32 %s49, 1
    %s51 = scalar_select %p48, %s49, %s50
    %p54 = pneg %p48
    %p55 = scmp.eq.s32.totalorder %s13, 1
    %p56 = por %p54, %p55
    %p57 = scmp.ne.s32.totalorder %s49, %s52
    %p58 = scmp.eq.s32.totalorder %s13, 0
    %p59 = por %p57, %p58
    %p60 = scmp.ne.s32.totalorder %s49, %s52
    %p61 = scmp.eq.s32.totalorder %s18, 1
    %p62 = por %p60, %p61
    %p63 = scmp.ne.s32.totalorder %s52, %s53
    %p64 = scmp.eq.s32.totalorder %s18, 0
    %p65 = por %p63, %p64
    %p66 = scmp.ne.s32.totalorder %s52, %s53
    %p67 = scmp.eq.s32.totalorder %s19, 1
    %p68 = por %p66, %p67
    %p70 = scmp.ne.s32.totalorder %s53, %s69
    %p71 = scmp.eq.s32.totalorder %s19, 0
    %p72 = por %p70, %p71
    %s73 = ssub.s32 %s13, %s20
    %p74 = scmp.eq.s32.totalorder %s73, 0
    %s76 = sadd.s32 %s75, 1
    %s77 = scalar_select %p74, %s75, %s76
    %p80 = pneg %p74
    %p81 = scmp.eq.s32.totalorder %s13, 1
    %p82 = por %p80, %p81
    %p83 = scmp.ne.s32.totalorder %s75, %s78
    %p84 = scmp.eq.s32.totalorder %s13, 0
    %p85 = por %p83, %p84
    %p86 = scmp.ne.s32.totalorder %s75, %s78
    %p87 = scmp.eq.s32.totalorder %s18, 1
    %p88 = por %p86, %p87
    %p89 = scmp.ne.s32.totalorder %s78, %s79
    %p90 = scmp.eq.s32.totalorder %s18, 0
    %p91 = por %p89, %p90
    %p92 = scmp.ne.s32.totalorder %s78, %s79
    %p93 = scmp.eq.s32.totalorder %s19, 1
    %p94 = por %p92, %p93
    %p96 = scmp.ne.s32.totalorder %s79, %s95
    %p97 = scmp.eq.s32.totalorder %s19, 0
    %p98 = por %p96, %p97
    %s100 = sadd.s32 %s99, 1
    %p103 = scmp.eq.s32.totalorder %s13, 1
    %p104 = scmp.ne.s32.totalorder %s99, %s101
    %p105 = scmp.eq.s32.totalorder %s13, 0
    %p106 = por %p104, %p105
    %p107 = scmp.ne.s32.totalorder %s99, %s101
    %p108 = scmp.eq.s32.totalorder %s18, 1
    %p109 = por %p107, %p108
    %p110 = scmp.ne.s32.totalorder %s101, %s102
    %p111 = scmp.eq.s32.totalorder %s18, 0
    %p112 = por %p110, %p111
    %p113 = scmp.ne.s32.totalorder %s101, %s102
    %p114 = scmp.eq.s32.totalorder %s19, 1
    %p115 = por %p113, %p114
    %p117 = scmp.ne.s32.totalorder %s102, %s116
    %p118 = scmp.eq.s32.totalorder %s19, 0
    %p119 = por %p117, %p118
    %s121 = sadd.s32 %s120, 1
    %p124 = scmp.eq.s32.totalorder %s13, 1
    %p125 = scmp.ne.s32.totalorder %s120, %s122
    %p126 = scmp.eq.s32.totalorder %s13, 0
    %p127 = por %p125, %p126
    %p128 = scmp.ne.s32.totalorder %s120, %s122
    %p129 = scmp.eq.s32.totalorder %s18, 1
    %p130 = por %p128, %p129
    %p131 = scmp.ne.s32.totalorder %s122, %s123
    %p132 = scmp.eq.s32.totalorder %s18, 0
    %p133 = por %p131, %p132
    %p134 = scmp.ne.s32.totalorder %s122, %s123
    %p135 = scmp.eq.s32.totalorder %s19, 1
    %p136 = por %p134, %p135
    %p138 = scmp.ne.s32.totalorder %s123, %s137
    %p139 = scmp.eq.s32.totalorder %s19, 0
    %p140 = por %p138, %p139
    %s142 = sadd.s32 %s141, 1
    %p145 = scmp.eq.s32.totalorder %s13, 1
    %p146 = scmp.ne.s32.totalorder %s141, %s143
    %p147 = scmp.eq.s32.totalorder %s13, 0
    %p148 = por %p146, %p147
    %p149 = scmp.ne.s32.totalorder %s141, %s143
    %p150 = scmp.eq.s32.totalorder %s18, 1
    %p151 = por %p149, %p150
    %p152 = scmp.ne.s32.totalorder %s143, %s144
    %p153 = scmp.eq.s32.totalorder %s18, 0
    %p154 = por %p152, %p153
    %p155 = scmp.ne.s32.totalorder %s143, %s144
    %p156 = scmp.eq.s32.totalorder %s19, 1
    %p157 = por %p155, %p156
    %p159 = scmp.ne.s32.totalorder %s144, %s158
    %p160 = scmp.eq.s32.totalorder %s19, 0
    %p161 = por %p159, %p160
    %s163 = sadd.s32 %s162, 1
    %p166 = scmp.eq.s32.totalorder %s13, 1
    %p167 = scmp.ne.s32.totalorder %s162, %s164
    %p168 = scmp.eq.s32.totalorder %s13, 0
    %p169 = por %p167, %p168
    %p170 = scmp.ne.s32.totalorder %s162, %s164
    %p171 = scmp.eq.s32.totalorder %s18, 1
    %p172 = por %p170, %p171
    %p173 = scmp.ne.s32.totalorder %s164, %s165
    %p174 = scmp.eq.s32.totalorder %s18, 0
    %p175 = por %p173, %p174
    %p176 = scmp.ne.s32.totalorder %s164, %s165
    %p177 = scmp.eq.s32.totalorder %s19, 1
    %p178 = por %p176, %p177
    %p180 = scmp.ne.s32.totalorder %s165, %s179
    %p181 = scmp.eq.s32.totalorder %s19, 0
    %p182 = por %p180, %p181
    %s183 = ssub.s32 %s13, %s20
    %p184 = scmp.eq.s32.totalorder %s183, 0
    %s186 = sadd.s32 %s185, 1
    %s187 = scalar_select %p184, %s185, %s186
    %p190 = pneg %p184
    %p191 = scmp.eq.s32.totalorder %s13, 1
    %p192 = por %p190, %p191
    %p193 = scmp.ne.s32.totalorder %s185, %s188
    %p194 = scmp.eq.s32.totalorder %s13, 0
    %p195 = por %p193, %p194
    %p196 = scmp.ne.s32.totalorder %s185, %s188
    %p197 = scmp.eq.s32.totalorder %s18, 1
    %p198 = por %p196, %p197
    %p199 = scmp.ne.s32.totalorder %s188, %s189
    %p200 = scmp.eq.s32.totalorder %s18, 0
    %p201 = por %p199, %p200
    %p202 = scmp.ne.s32.totalorder %s188, %s189
    %p203 = scmp.eq.s32.totalorder %s19, 1
    %p204 = por %p202, %p203
    %p206 = scmp.ne.s32.totalorder %s189, %s205
    %p207 = scmp.eq.s32.totalorder %s19, 0
    %p208 = por %p206, %p207
    %p209 = scmp.le.s32.totalorder 1, %s13
    %p210 = scmp.lt.s32.totalorder %s13, 3
    %p211 = pnand %p209, %p210
    %p212 = pneg %p211
    // Predicated region
    $region9: #{tpu_custom_call.1} parent=5 // pred_check
      _
    $region10: #{tpu_custom_call.1} parent=5 // pred_check_branch
      %214 = sbr.rel (%p211) target = $region12
    $region11: #{tpu_custom_call.1} parent=5 // pred_region
      %s215 = ssub.s32 %s13, 1
      // Predicated region
      $region13: #{tpu_custom_call.1} parent=11 // pred_check
        %p216 = pneg %p112
      $region14: #{tpu_custom_call.1} parent=11 // pred_check_branch
        %218 = sbr.rel (%p216) target = $region16
      $region15: #{tpu_custom_call.1} parent=11 // pred_region
        _
      $region16: #{tpu_custom_call.1} parent=11 // pred_fallthru
        _
      // Predicated region
      $region17: #{tpu_custom_call.1} parent=11 // pred_check
        %p219 = pneg %p133
      $region18: #{tpu_custom_call.1} parent=11 // pred_check_branch
        %221 = sbr.rel (%p219) target = $region20
      $region19: #{tpu_custom_call.1} parent=11 // pred_region
        _
      $region20: #{tpu_custom_call.1} parent=11 // pred_fallthru
        _
      // Predicated region
      $region21: #{tpu_custom_call.1} parent=11 // pred_check
        %p222 = pneg %p154
      $region22: #{tpu_custom_call.1} parent=11 // pred_check_branch
        %224 = sbr.rel (%p222) target = $region24
      $region23: #{tpu_custom_call.1} parent=11 // pred_region
        _
      $region24: #{tpu_custom_call.1} parent=11 // pred_fallthru
        _
      // Predicated region
      $region25: #{tpu_custom_call.1} parent=11 // pred_check
        %p225 = pneg %p175
      $region26: #{tpu_custom_call.1} parent=11 // pred_check_branch
        %227 = sbr.rel (%p225) target = $region28
      $region27: #{tpu_custom_call.1} parent=11 // pred_region
        _
      $region28: #{tpu_custom_call.1} parent=11 // pred_fallthru
        _
    $region12: #{tpu_custom_call.1} parent=5 // pred_fallthru
      _
    %p228 = scmp.lt.s32.totalorder %s13, 2
    // Predicated region
    $region29: #{tpu_custom_call.1} parent=5 // pred_check
      %p229 = pneg %p228
    $region30: #{tpu_custom_call.1} parent=5 // pred_check_branch
      %231 = sbr.rel (%p229) target = $region32
    $region31: #{tpu_custom_call.1} parent=5 // pred_region
      // Predicated region
      $region33: #{tpu_custom_call.1} parent=31 // pred_check
        %p232 = pneg %p33
      $region34: #{tpu_custom_call.1} parent=31 // pred_check_branch
        %234 = sbr.rel (%p232) target = $region36
      $region35: #{tpu_custom_call.1} parent=31 // pred_region
        %s235 = smul.u32 4, %s13
        %p236 = scmp.lt.s32.totalorder %s235, 7
        %s237 = scalar_select %p236, %s235, 7
        %s238 = smul.addr %s237, 4
        %s239 = scalar_lea.vmem %s0, %s238
        %s240 = smul.u32 4, %s13
      $region36: #{tpu_custom_call.1} parent=31 // pred_fallthru
        _
      // Predicated region
      $region37: #{tpu_custom_call.1} parent=31 // pred_check
        %p241 = pneg %p59
      $region38: #{tpu_custom_call.1} parent=31 // pred_check_branch
        %243 = sbr.rel (%p241) target = $region40
      $region39: #{tpu_custom_call.1} parent=31 // pred_region
        %s244 = smul.u32 4, %s13
        %p245 = scmp.lt.s32.totalorder %s244, 7
        %s246 = scalar_select %p245, %s244, 7
        %s247 = smul.addr %s246, 4
        %s248 = scalar_lea.vmem %s1, %s247
        %s249 = smul.u32 4, %s13
      $region40: #{tpu_custom_call.1} parent=31 // pred_fallthru
        _
      // Predicated region
      $region41: #{tpu_custom_call.1} parent=31 // pred_check
        %p250 = pneg %p85
      $region42: #{tpu_custom_call.1} parent=31 // pred_check_branch
        %252 = sbr.rel (%p250) target = $region44
      $region43: #{tpu_custom_call.1} parent=31 // pred_region
        %s253 = smul.u32 4, %s13
        %p254 = scmp.lt.s32.totalorder %s253, 7
        %s255 = scalar_select %p254, %s253, 7
        %s256 = smul.addr %s255, 4
        %s257 = scalar_lea.vmem %s2, %s256
        %s258 = smul.u32 4, %s13
      $region44: #{tpu_custom_call.1} parent=31 // pred_fallthru
        _
    $region32: #{tpu_custom_call.1} parent=5 // pred_fallthru
      _
    %p259 = scmp.le.s32.totalorder 1, %s13
    %p260 = scmp.lt.s32.totalorder %s13, 3
    %p261 = pnand %p259, %p260
    %p262 = pneg %p261
    // Predicated region
    $region45: #{tpu_custom_call.1} parent=5 // pred_check
      _
    $region46: #{tpu_custom_call.1} parent=5 // pred_check_branch
      %264 = sbr.rel (%p261) target = $region48
    $region47: #{tpu_custom_call.1} parent=5 // pred_region
      %s265 = ssub.s32 %s13, 1
      %s266 = smul.u32 4, %s18
      %p267 = scmp.lt.s32.totalorder %s266, 7
      %s268 = scalar_select %p267, %s266, 7
      %s269 = smul.addr %s268, 4
      %s270 = scalar_lea.vmem %s0, %s269
      %p271 = pneg %p39
      %p272 = pneg %p36
      %s273 = smul.u32 4, %s18
      %p274 = scmp.lt.s32.totalorder %s273, 7
      %s275 = scalar_select %p274, %s273, 7
      %s276 = smul.addr %s275, 4
      %s277 = scalar_lea.vmem %s1, %s276
      %p278 = pneg %p65
      %p279 = pneg %p62
      %s280 = smul.u32 4, %s18
      %p281 = scmp.lt.s32.totalorder %s280, 7
      %s282 = scalar_select %p281, %s280, 7
      %s283 = smul.addr %s282, 4
      %s284 = scalar_lea.vmem %s2, %s283
      %p285 = pneg %p91
      %p286 = pneg %p88
      %p287 = pneg %p112
      %p288 = pneg %p109
      %p289 = pneg %p133
      %p290 = pneg %p130
      %p291 = pneg %p154
      %p292 = pneg %p151
      %p293 = pneg %p175
      %p294 = pneg %p172
      %p295 = pneg %p201
      %p296 = pneg %p198
      %s297 = smul.u32 4, %s18
      %p298 = scmp.lt.s32.totalorder %s297, 7
      %s299 = scalar_select %p298, %s297, 7
      %s300 = smul.addr %s299, 8
      %s301 = scalar_lea.vmem %s7, %s300
      %s302 = smul.u32 4, %s18
      %p303 = scmp.lt.s32.totalorder %s302, 7
      %s304 = scalar_select %p303, %s302, 7
      %s305 = smul.addr %s304, 4
      %s306 = scalar_lea.vmem %s0, %s305
      %s307 = smul.u32 4, %s18
      %s308 = smul.u32 4, %s18
      %p309 = scmp.lt.s32.totalorder %s308, 7
      %s310 = scalar_select %p309, %s308, 7
      %s311 = smul.addr %s310, 4
      %s312 = scalar_lea.vmem %s1, %s311
      %s313 = smul.u32 4, %s18
      %s314 = smul.u32 4, %s18
      %p315 = scmp.lt.s32.totalorder %s314, 7
      %s316 = scalar_select %p315, %s314, 7
      %s317 = smul.addr %s316, 4
      %s318 = scalar_lea.vmem %s2, %s317
      %s319 = smul.u32 4, %s18
      %s320 = smul.u32 4, %s18
      %p321 = scmp.lt.s32.totalorder %s320, 7
      %s322 = scalar_select %p321, %s320, 7
      %s323 = smul.addr %s322, 8
      %s324 = scalar_lea.vmem %s7, %s323
      %s325 = smul.u32 4, %s18
      %v327 = vld [vmem:[%s3] sm:$0xf]
      %v328 = vld [vmem:[%s3 + $0x4] sm:$0xf]
      %v329 = vld [vmem:[%s3 + $0x8] sm:$0xf]
      %v330 = vld [vmem:[%s3 + $0xc] sm:$0xf]
      %v331 = vld [vmem:[%s306] sm:$0xf]
      %v332 = vld [vmem:[%s306 + $0x4] sm:$0xf]
      %v333 = vld [vmem:[%s306 + $0x8] sm:$0xf]
      %v334 = vld [vmem:[%s306 + $0xc] sm:$0xf]
      %v339 = vunpack.c.l.b16 %v331
      %v340 = vunpack.c.l.b16 %v332
      %v341 = vunpack.c.l.b16 %v333
      %v342 = vunpack.c.l.b16 %v334
      %v343 = vpack.c.b16 %v340, %v339
      %v344 = vpack.c.b16 %v342, %v341
      %v349 = vunpack.c.l.b16 %v327
      %v350 = vunpack.c.l.b16 %v328
      %v351 = vunpack.c.l.b16 %v329
      %v352 = vunpack.c.l.b16 %v330
      %v353 = vpack.c.b16 %v350, %v349
      %v354 = vpack.c.b16 %v352, %v351
      %vm357 = vcmask 261120
      %v359 = vsel %vm357, %v343, 0
      %v362 = vsel %vm357, %v344, 0
      %364 = vmatprep.subr.bf16.mxu0 0
      %365 = vmatpush1.bf16.msra.mxu0 %v353
      %366 = vmatprep.subr.bf16.mxu0 0
      %367 = vmatpush1.bf16.msra.mxu0 %v354
      %368 = vmatprep.subr.bf16.mxu0 0
      %369 = vmatpush1.bf16.msra.mxu0 0
      %370 = vmatprep.subr.bf16.mxu0 0
      %371 = vmatpush1.bf16.msra.mxu0 0
      %372 = vmatprep.subr.bf16.mxu0 0
      %373 = vmatpush1.bf16.msra.mxu0 0
      %374 = vmatprep.subr.bf16.mxu0 0
      %375 = vmatpush1.bf16.msra.mxu0 0
      %376 = vmatprep.subr.bf16.mxu0 0
      %377 = vmatpush1.bf16.msra.mxu0 0
      %378 = vmatprep.subr.bf16.mxu0 0
      %379 = vmatpush1.bf16.msra.mxu0 0
      %380 = vmatprep.subr.bf16.mxu0 0
      %381 = vmatpush1.bf16.msra.mxu0 0
      %382 = vmatprep.subr.bf16.mxu0 0
      %383 = vmatpush1.bf16.msra.mxu0 0
      %384 = vmatprep.subr.bf16.mxu0 0
      %385 = vmatpush1.bf16.msra.mxu0 0
      %386 = vmatprep.subr.bf16.mxu0 0
      %387 = vmatpush1.bf16.msra.mxu0 0
      %388 = vmatprep.subr.bf16.mxu0 0
      %389 = vmatpush1.bf16.msra.mxu0 0
      %390 = vmatprep.subr.bf16.mxu0 0
      %391 = vmatpush1.bf16.msra.mxu0 0
      %392 = vmatprep.subr.bf16.mxu0 0
      %393 = vmatpush1.bf16.msra.mxu0 0
      %394 = vmatprep.subr.bf16.mxu0 0
      %395 = vmatpush1.bf16.msra.mxu0 0
      %396 = vmatprep.mubr.bf16.mxu0 0
      %397 = vmatmul.mubr.bf16.gmra.mrb[0].mxu0 %v359
      %v398 = vpop.f32.mrb[0].mxu0
      %v399 = vadd.f32 0.0, %v398
      %v400 = vpop.f32.mrb[0].mxu0
      %v401 = vpop.f32.mrb[0].mxu0
      %v402 = vadd.f32 0.0, %v401
      %v403 = vpop.f32.mrb[0].mxu0
      %404 = vmatprep.mubr.bf16.mxu0 0
      %405 = vmatmul.mubr.bf16.gmra.mrb[0].mxu0 %v362
      %v406 = vpop.f32.mrb[0].mxu0
      %v407 = vadd.f32 0.0, %v406
      %v408 = vpop.f32.mrb[0].mxu0
      %v409 = vpop.f32.mrb[0].mxu0
      %v410 = vadd.f32 0.0, %v409
      %v411 = vpop.f32.mrb[0].mxu0
      %412 = vdwg.mxu0
      %v413 = vld [vmem:[%s312] sm:$0xf]
      %v414 = vld [vmem:[%s312 + $0x4] sm:$0xf]
      %v415 = vld [vmem:[%s312 + $0x8] sm:$0xf]
      %v416 = vld [vmem:[%s312 + $0xc] sm:$0xf]
      %v421 = vunpack.c.l.b16 %v413
      %v422 = vunpack.c.l.b16 %v414
      %v423 = vunpack.c.l.b16 %v415
      %v424 = vunpack.c.l.b16 %v416
      %v425 = vpack.c.b16 %v422, %v421
      %v426 = vpack.c.b16 %v424, %v423
      %427 = vrot.lane.b32.xlu0 %v353, 96
      %v428 = vpop.permute.xlu0 %427
      %429 = vrot.lane.b32.xlu0 %v354, 96
      %v430 = vpop.permute.xlu0 %429
      %v434 = vsel %vm357, %v425, 0
      %v437 = vsel %vm357, %v426, 0
      %439 = vmatprep.subr.bf16.mxu0 0
      %440 = vmatpush1.bf16.msra.mxu0 %v428
      %441 = vmatprep.subr.bf16.mxu0 0
      %442 = vmatpush1.bf16.msra.mxu0 %v430
      %443 = vmatprep.subr.bf16.mxu0 0
      %444 = vmatpush1.bf16.msra.mxu0 0
      %445 = vmatprep.subr.bf16.mxu0 0
      %446 = vmatpush1.bf16.msra.mxu0 0
      %447 = vmatprep.subr.bf16.mxu0 0
      %448 = vmatpush1.bf16.msra.mxu0 0
      %449 = vmatprep.subr.bf16.mxu0 0
      %450 = vmatpush1.bf16.msra.mxu0 0
      %451 = vmatprep.subr.bf16.mxu0 0
      %452 = vmatpush1.bf16.msra.mxu0 0
      %453 = vmatprep.subr.bf16.mxu0 0
      %454 = vmatpush1.bf16.msra.mxu0 0
      %455 = vmatprep.subr.bf16.mxu0 0
      %456 = vmatpush1.bf16.msra.mxu0 0
      %457 = vmatprep.subr.bf16.mxu0 0
      %458 = vmatpush1.bf16.msra.mxu0 0
      %459 = vmatprep.subr.bf16.mxu0 0
      %460 = vmatpush1.bf16.msra.mxu0 0
      %461 = vmatprep.subr.bf16.mxu0 0
      %462 = vmatpush1.bf16.msra.mxu0 0
      %463 = vmatprep.subr.bf16.mxu0 0
      %464 = vmatpush1.bf16.msra.mxu0 0
      %465 = vmatprep.subr.bf16.mxu0 0
      %466 = vmatpush1.bf16.msra.mxu0 0
      %467 = vmatprep.subr.bf16.mxu0 0
      %468 = vmatpush1.bf16.msra.mxu0 0
      %469 = vmatprep.subr.bf16.mxu0 0
      %470 = vmatpush1.bf16.msra.mxu0 0
      %471 = vmatprep.mubr.bf16.mxu0 0
      %472 = vmatmul.mubr.bf16.gmra.mrb[0].mxu0 %v434
      %v473 = vpop.f32.mrb[0].mxu0
      %v474 = vadd.f32 0.0, %v473
      %v475 = vpop.f32.mrb[0].mxu0
      %v476 = vpop.f32.mrb[0].mxu0
      %v477 = vadd.f32 0.0, %v476
      %v478 = vpop.f32.mrb[0].mxu0
      %479 = vmatprep.mubr.bf16.mxu0 0
      %480 = vmatmul.mubr.bf16.gmra.mrb[0].mxu0 %v437
      %v481 = vpop.f32.mrb[0].mxu0
      %v482 = vadd.f32 0.0, %v481
      %v483 = vpop.f32.mrb[0].mxu0
      %v484 = vpop.f32.mrb[0].mxu0
      %v485 = vadd.f32 0.0, %v484
      %v486 = vpop.f32.mrb[0].mxu0
      %487 = vdwg.mxu0
      %v488 = vld [vmem:[%s318] sm:$0xf]
      %v489 = vld [vmem:[%s318 + $0x4] sm:$0xf]
      %v490 = vld [vmem:[%s318 + $0x8] sm:$0xf]
      %v491 = vld [vmem:[%s318 + $0xc] sm:$0xf]
      %v496 = vunpack.c.l.b16 %v488
      %v497 = vunpack.c.l.b16 %v489
      %v498 = vunpack.c.l.b16 %v490
      %v499 = vunpack.c.l.b16 %v491
      %v500 = vpack.c.b16 %v497, %v496
      %v501 = vpack.c.b16 %v499, %v498
      %502 = vrot.lane.b32.xlu0 %v353, 64
      %v503 = vpop.permute.xlu0 %502
      %504 = vrot.lane.b32.xlu0 %v354, 64
      %v505 = vpop.permute.xlu0 %504
      %v509 = vsel %vm357, %v500, 0
      %v512 = vsel %vm357, %v501, 0
      %514 = vmatprep.subr.bf16.mxu0 0
      %515 = vmatpush1.bf16.msra.mxu0 %v503
      %516 = vmatprep.subr.bf16.mxu0 0
      %517 = vmatpush1.bf16.msra.mxu0 %v505
      %518 = vmatprep.subr.bf16.mxu0 0
      %519 = vmatpush1.bf16.msra.mxu0 0
      %520 = vmatprep.subr.bf16.mxu0 0
      %521 = vmatpush1.bf16.msra.mxu0 0
      %522 = vmatprep.subr.bf16.mxu0 0
      %523 = vmatpush1.bf16.msra.mxu0 0
      %524 = vmatprep.subr.bf16.mxu0 0
      %525 = vmatpush1.bf16.msra.mxu0 0
      %526 = vmatprep.subr.bf16.mxu0 0
      %527 = vmatpush1.bf16.msra.mxu0 0
      %528 = vmatprep.subr.bf16.mxu0 0
      %529 = vmatpush1.bf16.msra.mxu0 0
      %530 = vmatprep.subr.bf16.mxu0 0
      %531 = vmatpush1.bf16.msra.mxu0 0
      %532 = vmatprep.subr.bf16.mxu0 0
      %533 = vmatpush1.bf16.msra.mxu0 0
      %534 = vmatprep.subr.bf16.mxu0 0
      %535 = vmatpush1.bf16.msra.mxu0 0
      %536 = vmatprep.subr.bf16.mxu0 0
      %537 = vmatpush1.bf16.msra.mxu0 0
      %538 = vmatprep.subr.bf16.mxu0 0
      %539 = vmatpush1.bf16.msra.mxu0 0
      %540 = vmatprep.subr.bf16.mxu0 0
      %541 = vmatpush1.bf16.msra.mxu0 0
      %542 = vmatprep.subr.bf16.mxu0 0
      %543 = vmatpush1.bf16.msra.mxu0 0
      %544 = vmatprep.subr.bf16.mxu0 0
      %545 = vmatpush1.bf16.msra.mxu0 0
      %546 = vmatprep.mubr.bf16.mxu0 0
      %547 = vmatmul.mubr.bf16.gmra.mrb[0].mxu0 %v509
      %v548 = vpop.f32.mrb[0].mxu0
      %v549 = vadd.f32 0.0, %v548
      %v550 = vpop.f32.mrb[0].mxu0
      %v551 = vpop.f32.mrb[0].mxu0
      %v552 = vadd.f32 0.0, %v551
      %v553 = vpop.f32.mrb[0].mxu0
      %554 = vmatprep.mubr.bf16.mxu0 0
      %555 = vmatmul.mubr.bf16.gmra.mrb[0].mxu0 %v512
      %v556 = vpop.f32.mrb[0].mxu0
      %v557 = vadd.f32 0.0, %v556
      %v558 = vpop.f32.mrb[0].mxu0
      %v559 = vpop.f32.mrb[0].mxu0
      %v560 = vadd.f32 0.0, %v559
      %v561 = vpop.f32.mrb[0].mxu0
      %562 = vdwg.mxu0
      %v563 = vpack.c.bf16 %v402, %v399
      %v564 = vpack.c.bf16 %v410, %v407
      %v567 = vunpack.c.l.b16 %v563
      %v568 = vunpack.c.h.b16 %v563
      %v569 = vunpack.c.l.b16 %v564
      %v570 = vunpack.c.h.b16 %v564
      %v571 = vpack.c.b16 %v567, %v567
      %v572 = vpack.c.b16 %v568, %v568
      %v573 = vpack.c.b16 %v569, %v569
      %v574 = vpack.c.b16 %v570, %v570
      %v575 = vpack.c.bf16 %v477, %v474
      %v576 = vpack.c.bf16 %v485, %v482
      %v579 = vunpack.c.l.b16 %v575
      %v580 = vunpack.c.h.b16 %v575
      %v581 = vunpack.c.l.b16 %v576
      %v582 = vunpack.c.h.b16 %v576
      %v583 = vpack.c.b16 %v579, %v579
      %v584 = vpack.c.b16 %v580, %v580
      %v585 = vpack.c.b16 %v581, %v581
      %v586 = vpack.c.b16 %v582, %v582
      %v587 = vpack.c.bf16 %v552, %v549
      %v588 = vpack.c.bf16 %v560, %v557
      %v591 = vunpack.c.l.b16 %v587
      %v592 = vunpack.c.h.b16 %v587
      %v593 = vunpack.c.l.b16 %v588
      %v594 = vunpack.c.h.b16 %v588
      %v595 = vpack.c.b16 %v591, %v591
      %v596 = vpack.c.b16 %v592, %v592
      %v597 = vpack.c.b16 %v593, %v593
      %v598 = vpack.c.b16 %v594, %v594
      %v599 = vld [vmem:[%s4] sm:$0xf]
      %v600 = vld [vmem:[%s4 + $0x4] sm:$0xf]
      %v601 = vld [vmem:[%s4 + $0x8] sm:$0xf]
      %v602 = vld [vmem:[%s4 + $0xc] sm:$0xf]
      %vm603 = vcmask 1043456
      %v605 = vsel %vm603, %v583, %v583
      %v608 = vsel %vm603, %v584, %v584
      %v611 = vsel %vm603, %v585, %v585
      %v614 = vsel %vm603, %v586, %v586
      %v620 = vunpack.c.l.b16 %v599
      %v621 = vunpack.c.l.b16 %v600
      %v622 = vunpack.c.l.b16 %v601
      %v623 = vunpack.c.l.b16 %v602
      %v624 = vpack.c.b16 %v621, %v620
      %v625 = vpack.c.b16 %v623, %v622
      %v628 = vmul.bf16 %v605, %v624
      %v629 = vmul.bf16 %v605, %v625
      %v630 = vmul.bf16 %v608, %v624
      %v631 = vmul.bf16 %v608, %v625
      %v632 = vmul.bf16 %v611, %v624
      %v633 = vmul.bf16 %v611, %v625
      %v634 = vmul.bf16 %v614, %v624
      %v635 = vmul.bf16 %v614, %v625
      %v637 = vsel %vm603, %v595, %v595
      %v640 = vsel %vm603, %v596, %v596
      %v643 = vsel %vm603, %v597, %v597
      %v646 = vsel %vm603, %v598, %v598
      %v648 = vmul.bf16 %v637, %v624
      %v649 = vmul.bf16 %v637, %v625
      %v650 = vmul.bf16 %v640, %v624
      %v651 = vmul.bf16 %v640, %v625
      %v652 = vmul.bf16 %v643, %v624
      %v653 = vmul.bf16 %v643, %v625
      %v654 = vmul.bf16 %v646, %v624
      %v655 = vmul.bf16 %v646, %v625
      %v657 = vsel %vm357, %v571, 0
      %v660 = vsel %vm357, %v628, 0
      %v663 = vsel %vm357, %v629, 0
      %665 = vmatprep.subr.bf16.mxu0 0
      %666 = vmatpush1.bf16.xpose.msra.mxu0 %v660
      %667 = vmatprep.subr.bf16.mxu0 0
      %668 = vmatpush1.bf16.xpose.msra.mxu0 %v663
      %669 = vmatprep.subr.bf16.mxu0 0
      %670 = vmatpush1.bf16.xpose.msra.mxu0 0
      %671 = vmatprep.subr.bf16.mxu0 0
      %672 = vmatpush1.bf16.xpose.msra.mxu0 0
      %673 = vmatprep.subr.bf16.mxu0 0
      %674 = vmatpush1.bf16.xpose.msra.mxu0 0
      %675 = vmatprep.subr.bf16.mxu0 0
      %676 = vmatpush1.bf16.xpose.msra.mxu0 0
      %677 = vmatprep.subr.bf16.mxu0 0
      %678 = vmatpush1.bf16.xpose.msra.mxu0 0
      %679 = vmatprep.subr.bf16.mxu0 0
      %680 = vmatpush1.bf16.xpose.msra.mxu0 0
      %681 = vmatprep.subr.bf16.mxu0 0
      %682 = vmatpush1.bf16.xpose.msra.mxu0 0
      %683 = vmatprep.subr.bf16.mxu0 0
      %684 = vmatpush1.bf16.xpose.msra.mxu0 0
      %685 = vmatprep.subr.bf16.mxu0 0
      %686 = vmatpush1.bf16.xpose.msra.mxu0 0
      %687 = vmatprep.subr.bf16.mxu0 0
      %688 = vmatpush1.bf16.xpose.msra.mxu0 0
      %689 = vmatprep.subr.bf16.mxu0 0
      %690 = vmatpush1.bf16.xpose.msra.mxu0 0
      %691 = vmatprep.subr.bf16.mxu0 0
      %692 = vmatpush1.bf16.xpose.msra.mxu0 0
      %693 = vmatprep.subr.bf16.mxu0 0
      %694 = vmatpush1.bf16.xpose.msra.mxu0 0
      %695 = vmatprep.subr.bf16.mxu0 0
      %696 = vmatpush1.bf16.xpose.msra.mxu0 0
      %697 = vmatprep.mubr.bf16.mxu0 0
      %698 = vmatmul.mubr.bf16.gmra.mrb[0].mxu0 %v657
      %v699 = vpop.f32.mrb[0].mxu0
      %v700 = vadd.f32 0.0, %v699
      %v701 = vpop.f32.mrb[0].mxu0
      %v702 = vpop.f32.mrb[0].mxu0
      %v703 = vpop.f32.mrb[0].mxu0
      %704 = vdwg.mxu0
      %v706 = vsel %vm357, %v572, 0
      %v709 = vsel %vm357, %v630, 0
      %v712 = vsel %vm357, %v631, 0
      %714 = vmatprep.subr.bf16.mxu0 0
      %715 = vmatpush1.bf16.xpose.msra.mxu0 %v709
      %716 = vmatprep.subr.bf16.mxu0 0
      %717 = vmatpush1.bf16.xpose.msra.mxu0 %v712
      %718 = vmatprep.subr.bf16.mxu0 0
      %719 = vmatpush1.bf16.xpose.msra.mxu0 0
      %720 = vmatprep.subr.bf16.mxu0 0
      %721 = vmatpush1.bf16.xpose.msra.mxu0 0
      %722 = vmatprep.subr.bf16.mxu0 0
      %723 = vmatpush1.bf16.xpose.msra.mxu0 0
      %724 = vmatprep.subr.bf16.mxu0 0
      %725 = vmatpush1.bf16.xpose.msra.mxu0 0
      %726 = vmatprep.subr.bf16.mxu0 0
      %727 = vmatpush1.bf16.xpose.msra.mxu0 0
      %728 = vmatprep.subr.bf16.mxu0 0
      %729 = vmatpush1.bf16.xpose.msra.mxu0 0
      %730 = vmatprep.subr.bf16.mxu0 0
      %731 = vmatpush1.bf16.xpose.msra.mxu0 0
      %732 = vmatprep.subr.bf16.mxu0 0
      %733 = vmatpush1.bf16.xpose.msra.mxu0 0
      %734 = vmatprep.subr.bf16.mxu0 0
      %735 = vmatpush1.bf16.xpose.msra.mxu0 0
      %736 = vmatprep.subr.bf16.mxu0 0
      %737 = vmatpush1.bf16.xpose.msra.mxu0 0
      %738 = vmatprep.subr.bf16.mxu0 0
      %739 = vmatpush1.bf16.xpose.msra.mxu0 0
      %740 = vmatprep.subr.bf16.mxu0 0
      %741 = vmatpush1.bf16.xpose.msra.mxu0 0
      %742 = vmatprep.subr.bf16.mxu0 0
      %743 = vmatpush1.bf16.xpose.msra.mxu0 0
      %744 = vmatprep.subr.bf16.mxu0 0
      %745 = vmatpush1.bf16.xpose.msra.mxu0 0
      %746 = vmatprep.mubr.bf16.mxu0 0
      %747 = vmatmul.mubr.bf16.gmra.mrb[0].mxu0 %v706
      %v748 = vpop.f32.mrb[0].mxu0
      %v749 = vadd.f32 0.0, %v748
      %v750 = vpop.f32.mrb[0].mxu0
      %v751 = vpop.f32.mrb[0].mxu0
      %v752 = vpop.f32.mrb[0].mxu0
      %753 = vdwg.mxu0
      %v755 = vsel %vm357, %v573, 0
      %v758 = vsel %vm357, %v632, 0
      %v761 = vsel %vm357, %v633, 0
      %763 = vmatprep.subr.bf16.mxu0 0
      %764 = vmatpush1.bf16.xpose.msra.mxu0 %v758
      %765 = vmatprep.subr.bf16.mxu0 0
      %766 = vmatpush1.bf16.xpose.msra.mxu0 %v761
      %767 = vmatprep.subr.bf16.mxu0 0
      %768 = vmatpush1.bf16.xpose.msra.mxu0 0
      %769 = vmatprep.subr.bf16.mxu0 0
      %770 = vmatpush1.bf16.xpose.msra.mxu0 0
      %771 = vmatprep.subr.bf16.mxu0 0
      %772 = vmatpush1.bf16.xpose.msra.mxu0 0
      %773 = vmatprep.subr.bf16.mxu0 0
      %774 = vmatpush1.bf16.xpose.msra.mxu0 0
      %775 = vmatprep.subr.bf16.mxu0 0
      %776 = vmatpush1.bf16.xpose.msra.mxu0 0
      %777 = vmatprep.subr.bf16.mxu0 0
      %778 = vmatpush1.bf16.xpose.msra.mxu0 0
      %779 = vmatprep.subr.bf16.mxu0 0
      %780 = vmatpush1.bf16.xpose.msra.mxu0 0
      %781 = vmatprep.subr.bf16.mxu0 0
      %782 = vmatpush1.bf16.xpose.msra.mxu0 0
      %783 = vmatprep.subr.bf16.mxu0 0
      %784 = vmatpush1.bf16.xpose.msra.mxu0 0
      %785 = vmatprep.subr.bf16.mxu0 0
      %786 = vmatpush1.bf16.xpose.msra.mxu0 0
      %787 = vmatprep.subr.bf16.mxu0 0
      %788 = vmatpush1.bf16.xpose.msra.mxu0 0
      %789 = vmatprep.subr.bf16.mxu0 0
      %790 = vmatpush1.bf16.xpose.msra.mxu0 0
      %791 = vmatprep.subr.bf16.mxu0 0
      %792 = vmatpush1.bf16.xpose.msra.mxu0 0
      %793 = vmatprep.subr.bf16.mxu0 0
      %794 = vmatpush1.bf16.xpose.msra.mxu0 0
      %795 = vmatprep.mubr.bf16.mxu0 0
      %796 = vmatmul.mubr.bf16.gmra.mrb[0].mxu0 %v755
      %v797 = vpop.f32.mrb[0].mxu0
      %v798 = vadd.f32 0.0, %v797
      %v799 = vpop.f32.mrb[0].mxu0
      %v800 = vpop.f32.mrb[0].mxu0
      %v801 = vpop.f32.mrb[0].mxu0
      %802 = vdwg.mxu0
      %v804 = vsel %vm357, %v574, 0
      %v807 = vsel %vm357, %v634, 0
      %v810 = vsel %vm357, %v635, 0
      %812 = vmatprep.subr.bf16.mxu0 0
      %813 = vmatpush1.bf16.xpose.msra.mxu0 %v807
      %814 = vmatprep.subr.bf16.mxu0 0
      %815 = vmatpush1.bf16.xpose.msra.mxu0 %v810
      %816 = vmatprep.subr.bf16.mxu0 0
      %817 = vmatpush1.bf16.xpose.msra.mxu0 0
      %818 = vmatprep.subr.bf16.mxu0 0
      %819 = vmatpush1.bf16.xpose.msra.mxu0 0
      %820 = vmatprep.subr.bf16.mxu0 0
      %821 = vmatpush1.bf16.xpose.msra.mxu0 0
      %822 = vmatprep.subr.bf16.mxu0 0
      %823 = vmatpush1.bf16.xpose.msra.mxu0 0
      %824 = vmatprep.subr.bf16.mxu0 0
      %825 = vmatpush1.bf16.xpose.msra.mxu0 0
      %826 = vmatprep.subr.bf16.mxu0 0
      %827 = vmatpush1.bf16.xpose.msra.mxu0 0
      %828 = vmatprep.subr.bf16.mxu0 0
      %829 = vmatpush1.bf16.xpose.msra.mxu0 0
      %830 = vmatprep.subr.bf16.mxu0 0
      %831 = vmatpush1.bf16.xpose.msra.mxu0 0
      %832 = vmatprep.subr.bf16.mxu0 0
      %833 = vmatpush1.bf16.xpose.msra.mxu0 0
      %834 = vmatprep.subr.bf16.mxu0 0
      %835 = vmatpush1.bf16.xpose.msra.mxu0 0
      %836 = vmatprep.subr.bf16.mxu0 0
      %837 = vmatpush1.bf16.xpose.msra.mxu0 0
      %838 = vmatprep.subr.bf16.mxu0 0
      %839 = vmatpush1.bf16.xpose.msra.mxu0 0
      %840 = vmatprep.subr.bf16.mxu0 0
      %841 = vmatpush1.bf16.xpose.msra.mxu0 0
      %842 = vmatprep.subr.bf16.mxu0 0
      %843 = vmatpush1.bf16.xpose.msra.mxu0 0
      %844 = vmatprep.mubr.bf16.mxu0 0
      %845 = vmatmul.mubr.bf16.gmra.mrb[0].mxu0 %v804
      %v846 = vpop.f32.mrb[0].mxu0
      %v847 = vadd.f32 0.0, %v846
      %v848 = vpop.f32.mrb[0].mxu0
      %v849 = vpop.f32.mrb[0].mxu0
      %v850 = vpop.f32.mrb[0].mxu0
      %851 = vdwg.mxu0
      %v852 = vsel %vm357, %v700, -inf
      %853 = vmax.xlane.f32.xlu0 %v852
      %v854 = vpop.xlane.xlu0 %853
      %v855 = vsel %vm357, %v749, -inf
      %856 = vmax.xlane.f32.xlu0 %v855
      %v857 = vpop.xlane.xlu0 %856
      %v858 = vsel %vm357, %v798, -inf
      %859 = vmax.xlane.f32.xlu0 %v858
      %v860 = vpop.xlane.xlu0 %859
      %v861 = vsel %vm357, %v847, -inf
      %862 = vmax.xlane.f32.xlu0 %v861
      %v863 = vpop.xlane.xlu0 %862
      %v864 = vsub.f32 %v700, %v854
      %v865 = vsub.f32 %v749, %v857
      %v866 = vsub.f32 %v798, %v860
      %v867 = vsub.f32 %v847, %v863
      %v868 = vmul.f32 %v864, 1.442695
      %v869 = vpow.pop %v868
      %v870 = vmul.f32 %v865, 1.442695
      %v871 = vpow.pop %v870
      %v872 = vmul.f32 %v866, 1.442695
      %v873 = vpow.pop %v872
      %v874 = vmul.f32 %v867, 1.442695
      %v875 = vpow.pop %v874
      %v876 = vpack.c.bf16 %v869, %v869
      %v877 = vpack.c.bf16 %v871, %v871
      %v878 = vpack.c.bf16 %v873, %v873
      %v879 = vpack.c.bf16 %v875, %v875
      %v881 = vsel %vm357, %v876, 0
      %883 = vmatprep.subr.bf16.mxu0 0
      %884 = vmatpush1.bf16.msra.mxu0 %v648
      %885 = vmatprep.subr.bf16.mxu0 0
      %886 = vmatpush1.bf16.msra.mxu0 %v649
      %887 = vmatprep.subr.bf16.mxu0 0
      %888 = vmatpush1.bf16.msra.mxu0 0
      %889 = vmatprep.subr.bf16.mxu0 0
      %890 = vmatpush1.bf16.msra.mxu0 0
      %891 = vmatprep.subr.bf16.mxu0 0
      %892 = vmatpush1.bf16.msra.mxu0 0
      %893 = vmatprep.subr.bf16.mxu0 0
      %894 = vmatpush1.bf16.msra.mxu0 0
      %895 = vmatprep.subr.bf16.mxu0 0
      %896 = vmatpush1.bf16.msra.mxu0 0
      %897 = vmatprep.subr.bf16.mxu0 0
      %898 = vmatpush1.bf16.msra.mxu0 0
      %899 = vmatprep.subr.bf16.mxu0 0
      %900 = vmatpush1.bf16.msra.mxu0 0
      %901 = vmatprep.subr.bf16.mxu0 0
      %902 = vmatpush1.bf16.msra.mxu0 0
      %903 = vmatprep.subr.bf16.mxu0 0
      %904 = vmatpush1.bf16.msra.mxu0 0
      %905 = vmatprep.subr.bf16.mxu0 0
      %906 = vmatpush1.bf16.msra.mxu0 0
      %907 = vmatprep.subr.bf16.mxu0 0
      %908 = vmatpush1.bf16.msra.mxu0 0
      %909 = vmatprep.subr.bf16.mxu0 0
      %910 = vmatpush1.bf16.msra.mxu0 0
      %911 = vmatprep.subr.bf16.mxu0 0
      %912 = vmatpush1.bf16.msra.mxu0 0
      %913 = vmatprep.subr.bf16.mxu0 0
      %914 = vmatpush1.bf16.msra.mxu0 0
      %915 = vmatprep.mubr.bf16.mxu0 0
      %916 = vmatmul.mubr.bf16.gmra.mrb[0].mxu0 %v881
      %v917 = vpop.f32.mrb[0].mxu0
      %v918 = vadd.f32 0.0, %v917
      %v919 = vpop.f32.mrb[0].mxu0
      %v920 = vpop.f32.mrb[0].mxu0
      %v921 = vpop.f32.mrb[0].mxu0
      %922 = vdwg.mxu0
      %v924 = vsel %vm357, %v877, 0
      %926 = vmatprep.subr.bf16.mxu0 0
      %927 = vmatpush1.bf16.msra.mxu0 %v650
      %928 = vmatprep.subr.bf16.mxu0 0
      %929 = vmatpush1.bf16.msra.mxu0 %v651
      %930 = vmatprep.subr.bf16.mxu0 0
      %931 = vmatpush1.bf16.msra.mxu0 0
      %932 = vmatprep.subr.bf16.mxu0 0
      %933 = vmatpush1.bf16.msra.mxu0 0
      %934 = vmatprep.subr.bf16.mxu0 0
      %935 = vmatpush1.bf16.msra.mxu0 0
      %936 = vmatprep.subr.bf16.mxu0 0
      %937 = vmatpush1.bf16.msra.mxu0 0
      %938 = vmatprep.subr.bf16.mxu0 0
      %939 = vmatpush1.bf16.msra.mxu0 0
      %940 = vmatprep.subr.bf16.mxu0 0
      %941 = vmatpush1.bf16.msra.mxu0 0
      %942 = vmatprep.subr.bf16.mxu0 0
      %943 = vmatpush1.bf16.msra.mxu0 0
      %944 = vmatprep.subr.bf16.mxu0 0
      %945 = vmatpush1.bf16.msra.mxu0 0
      %946 = vmatprep.subr.bf16.mxu0 0
      %947 = vmatpush1.bf16.msra.mxu0 0
      %948 = vmatprep.subr.bf16.mxu0 0
      %949 = vmatpush1.bf16.msra.mxu0 0
      %950 = vmatprep.subr.bf16.mxu0 0
      %951 = vmatpush1.bf16.msra.mxu0 0
      %952 = vmatprep.subr.bf16.mxu0 0
      %953 = vmatpush1.bf16.msra.mxu0 0
      %954 = vmatprep.subr.bf16.mxu0 0
      %955 = vmatpush1.bf16.msra.mxu0 0
      %956 = vmatprep.subr.bf16.mxu0 0
      %957 = vmatpush1.bf16.msra.mxu0 0
      %958 = vmatprep.mubr.bf16.mxu0 0
      %959 = vmatmul.mubr.bf16.gmra.mrb[0].mxu0 %v924
      %v960 = vpop.f32.mrb[0].mxu0
      %v961 = vadd.f32 0.0, %v960
      %v962 = vpop.f32.mrb[0].mxu0
      %v963 = vpop.f32.mrb[0].mxu0
      %v964 = vpop.f32.mrb[0].mxu0
      %965 = vdwg.mxu0
      %v967 = vsel %vm357, %v878, 0
      %969 = vmatprep.subr.bf16.mxu0 0
      %970 = vmatpush1.bf16.msra.mxu0 %v652
      %971 = vmatprep.subr.bf16.mxu0 0
      %972 = vmatpush1.bf16.msra.mxu0 %v653
      %973 = vmatprep.subr.bf16.mxu0 0
      %974 = vmatpush1.bf16.msra.mxu0 0
      %975 = vmatprep.subr.bf16.mxu0 0
      %976 = vmatpush1.bf16.msra.mxu0 0
      %977 = vmatprep.subr.bf16.mxu0 0
      %978 = vmatpush1.bf16.msra.mxu0 0
      %979 = vmatprep.subr.bf16.mxu0 0
      %980 = vmatpush1.bf16.msra.mxu0 0
      %981 = vmatprep.subr.bf16.mxu0 0
      %982 = vmatpush1.bf16.msra.mxu0 0
      %983 = vmatprep.subr.bf16.mxu0 0
      %984 = vmatpush1.bf16.msra.mxu0 0
      %985 = vmatprep.subr.bf16.mxu0 0
      %986 = vmatpush1.bf16.msra.mxu0 0
      %987 = vmatprep.subr.bf16.mxu0 0
      %988 = vmatpush1.bf16.msra.mxu0 0
      %989 = vmatprep.subr.bf16.mxu0 0
      %990 = vmatpush1.bf16.msra.mxu0 0
      %991 = vmatprep.subr.bf16.mxu0 0
      %992 = vmatpush1.bf16.msra.mxu0 0
      %993 = vmatprep.subr.bf16.mxu0 0
      %994 = vmatpush1.bf16.msra.mxu0 0
      %995 = vmatprep.subr.bf16.mxu0 0
      %996 = vmatpush1.bf16.msra.mxu0 0
      %997 = vmatprep.subr.bf16.mxu0 0
      %998 = vmatpush1.bf16.msra.mxu0 0
      %999 = vmatprep.subr.bf16.mxu0 0
      %1000 = vmatpush1.bf16.msra.mxu0 0
      %1001 = vmatprep.mubr.bf16.mxu0 0
      %1002 = vmatmul.mubr.bf16.gmra.mrb[0].mxu0 %v967
      %v1003 = vpop.f32.mrb[0].mxu0
      %v1004 = vadd.f32 0.0, %v1003
      %v1005 = vpop.f32.mrb[0].mxu0
      %v1006 = vpop.f32.mrb[0].mxu0
      %v1007 = vpop.f32.mrb[0].mxu0
      %1008 = vdwg.mxu0
      %v1010 = vsel %vm357, %v879, 0
      %1012 = vmatprep.subr.bf16.mxu0 0
      %1013 = vmatpush1.bf16.msra.mxu0 %v654
      %1014 = vmatprep.subr.bf16.mxu0 0
      %1015 = vmatpush1.bf16.msra.mxu0 %v655
      %1016 = vmatprep.subr.bf16.mxu0 0
      %1017 = vmatpush1.bf16.msra.mxu0 0
      %1018 = vmatprep.subr.bf16.mxu0 0
      %1019 = vmatpush1.bf16.msra.mxu0 0
      %1020 = vmatprep.subr.bf16.mxu0 0
      %1021 = vmatpush1.bf16.msra.mxu0 0
      %1022 = vmatprep.subr.bf16.mxu0 0
      %1023 = vmatpush1.bf16.msra.mxu0 0
      %1024 = vmatprep.subr.bf16.mxu0 0
      %1025 = vmatpush1.bf16.msra.mxu0 0
      %1026 = vmatprep.subr.bf16.mxu0 0
      %1027 = vmatpush1.bf16.msra.mxu0 0
      %1028 = vmatprep.subr.bf16.mxu0 0
      %1029 = vmatpush1.bf16.msra.mxu0 0
      %1030 = vmatprep.subr.bf16.mxu0 0
      %1031 = vmatpush1.bf16.msra.mxu0 0
      %1032 = vmatprep.subr.bf16.mxu0 0
      %1033 = vmatpush1.bf16.msra.mxu0 0
      %1034 = vmatprep.subr.bf16.mxu0 0
      %1035 = vmatpush1.bf16.msra.mxu0 0
      %1036 = vmatprep.subr.bf16.mxu0 0
      %1037 = vmatpush1.bf16.msra.mxu0 0
      %1038 = vmatprep.subr.bf16.mxu0 0
      %1039 = vmatpush1.bf16.msra.mxu0 0
      %1040 = vmatprep.subr.bf16.mxu0 0
      %1041 = vmatpush1.bf16.msra.mxu0 0
      %1042 = vmatprep.subr.bf16.mxu0 0
      %1043 = vmatpush1.bf16.msra.mxu0 0
      %1044 = vmatprep.mubr.bf16.mxu0 0
      %1045 = vmatmul.mubr.bf16.gmra.mrb[0].mxu0 %v1010
      %v1046 = vpop.f32.mrb[0].mxu0
      %v1047 = vadd.f32 0.0, %v1046
      %v1048 = vpop.f32.mrb[0].mxu0
      %v1049 = vpop.f32.mrb[0].mxu0
      %v1050 = vpop.f32.mrb[0].mxu0
      %1051 = vdwg.mxu0
      %v1056 = vunpack.c.l.b16 %v876
      %v1057 = vunpack.c.l.b16 %v877
      %v1058 = vunpack.c.l.b16 %v878
      %v1059 = vunpack.c.l.b16 %v879
      %v1060 = vpack.c.b16 %v1057, %v1056
      %v1061 = vpack.c.b16 %v1059, %v1058
      %v1063 = vsel %vm357, %v1060, 0
      %v1066 = vsel %vm357, %v1061, 0
      %1068 = vmatprep.subr.bf16.mxu0 0
      %1069 = vmatpush1.bf16.msra.mxu0 %v624
      %1070 = vmatprep.subr.bf16.mxu0 0
      %1071 = vmatpush1.bf16.msra.mxu0 %v625
      %1072 = vmatprep.subr.bf16.mxu0 0
      %1073 = vmatpush1.bf16.msra.mxu0 0
      %1074 = vmatprep.subr.bf16.mxu0 0
      %1075 = vmatpush1.bf16.msra.mxu0 0
      %1076 = vmatprep.subr.bf16.mxu0 0
      %1077 = vmatpush1.bf16.msra.mxu0 0
      %1078 = vmatprep.subr.bf16.mxu0 0
      %1079 = vmatpush1.bf16.msra.mxu0 0
      %1080 = vmatprep.subr.bf16.mxu0 0
      %1081 = vmatpush1.bf16.msra.mxu0 0
      %1082 = vmatprep.subr.bf16.mxu0 0
      %1083 = vmatpush1.bf16.msra.mxu0 0
      %1084 = vmatprep.subr.bf16.mxu0 0
      %1085 = vmatpush1.bf16.msra.mxu0 0
      %1086 = vmatprep.subr.bf16.mxu0 0
      %1087 = vmatpush1.bf16.msra.mxu0 0
      %1088 = vmatprep.subr.bf16.mxu0 0
      %1089 = vmatpush1.bf16.msra.mxu0 0
      %1090 = vmatprep.subr.bf16.mxu0 0
      %1091 = vmatpush1.bf16.msra.mxu0 0
      %1092 = vmatprep.subr.bf16.mxu0 0
      %1093 = vmatpush1.bf16.msra.mxu0 0
      %1094 = vmatprep.subr.bf16.mxu0 0
      %1095 = vmatpush1.bf16.msra.mxu0 0
      %1096 = vmatprep.subr.bf16.mxu0 0
      %1097 = vmatpush1.bf16.msra.mxu0 0
      %1098 = vmatprep.subr.bf16.mxu0 0
      %1099 = vmatpush1.bf16.msra.mxu0 0
      %1100 = vmatprep.mubr.bf16.mxu0 0
      %1101 = vmatmul.mubr.bf16.gmra.mrb[0].mxu0 %v1063
      %v1102 = vpop.f32.mrb[0].mxu0
      %v1103 = vadd.f32 0.0, %v1102
      %v1104 = vpop.f32.mrb[0].mxu0
      %v1105 = vpop.f32.mrb[0].mxu0
      %v1106 = vadd.f32 0.0, %v1105
      %v1107 = vpop.f32.mrb[0].mxu0
      %1108 = vmatprep.mubr.bf16.mxu0 0
      %1109 = vmatmul.mubr.bf16.gmra.mrb[0].mxu0 %v1066
      %v1110 = vpop.f32.mrb[0].mxu0
      %v1111 = vadd.f32 0.0, %v1110
      %v1112 = vpop.f32.mrb[0].mxu0
      %v1113 = vpop.f32.mrb[0].mxu0
      %v1114 = vadd.f32 0.0, %v1113
      %v1115 = vpop.f32.mrb[0].mxu0
      %1116 = vdwg.mxu0
      %v1117 = vrcp.pop %v1103
      %v1118 = vrcp.pop %v1106
      %v1119 = vrcp.pop %v1111
      %v1120 = vrcp.pop %v1114
      %v1121 = vmul.f32 %v918, %v1117
      %v1122 = vmul.f32 %v961, %v1118
      %v1123 = vmul.f32 %v1004, %v1119
      %v1124 = vmul.f32 %v1047, %v1120
      %v1125 = vpack.c.bf16 %v1122, %v1121
      %v1126 = vpack.c.bf16 %v1124, %v1123
      %v1127 = vld [vmem:[%s5] sm:$0xf]
      %v1128 = vld [vmem:[%s5 + $0x4] sm:$0xf]
      %v1129 = vld [vmem:[%s5 + $0x8] sm:$0xf]
      %v1130 = vld [vmem:[%s5 + $0xc] sm:$0xf]
      %v1131 = vld [vmem:[%s6] sm:$0x1]
      %v1133 = vlaneseq
      %v1134 = vshrl.u32 %v1133, 7
      %v1135 = vsub.s32 0, %v1134
      %v1136 = vrot.slane %v1131, %v1135
      %v1142 = vunpack.c.l.b16 %v1127
      %v1143 = vunpack.c.l.b16 %v1128
      %v1144 = vunpack.c.l.b16 %v1129
      %v1145 = vunpack.c.l.b16 %v1130
      %v1146 = vpack.c.b16 %v1143, %v1142
      %v1147 = vpack.c.b16 %v1145, %v1144
      %v1151 = vsel %vm357, %v1125, 0
      %v1154 = vsel %vm357, %v1126, 0
      %1156 = vmatprep.subr.bf16.mxu0 0
      %1157 = vmatpush1.bf16.msra.mxu0 %v1146
      %1158 = vmatprep.subr.bf16.mxu0 0
      %1159 = vmatpush1.bf16.msra.mxu0 %v1147
      %1160 = vmatprep.subr.bf16.mxu0 0
      %1161 = vmatpush1.bf16.msra.mxu0 0
      %1162 = vmatprep.subr.bf16.mxu0 0
      %1163 = vmatpush1.bf16.msra.mxu0 0
      %1164 = vmatprep.subr.bf16.mxu0 0
      %1165 = vmatpush1.bf16.msra.mxu0 0
      %1166 = vmatprep.subr.bf16.mxu0 0
      %1167 = vmatpush1.bf16.msra.mxu0 0
      %1168 = vmatprep.subr.bf16.mxu0 0
      %1169 = vmatpush1.bf16.msra.mxu0 0
      %1170 = vmatprep.subr.bf16.mxu0 0
      %1171 = vmatpush1.bf16.msra.mxu0 0
      %1172 = vmatprep.subr.bf16.mxu0 0
      %1173 = vmatpush1.bf16.msra.mxu0 0
      %1174 = vmatprep.subr.bf16.mxu0 0
      %1175 = vmatpush1.bf16.msra.mxu0 0
      %1176 = vmatprep.subr.bf16.mxu0 0
      %1177 = vmatpush1.bf16.msra.mxu0 0
      %1178 = vmatprep.subr.bf16.mxu0 0
      %1179 = vmatpush1.bf16.msra.mxu0 0
      %1180 = vmatprep.subr.bf16.mxu0 0
      %1181 = vmatpush1.bf16.msra.mxu0 0
      %1182 = vmatprep.subr.bf16.mxu0 0
      %1183 = vmatpush1.bf16.msra.mxu0 0
      %1184 = vmatprep.subr.bf16.mxu0 0
      %1185 = vmatpush1.bf16.msra.mxu0 0
      %1186 = vmatprep.subr.bf16.mxu0 0
      %1187 = vmatpush1.bf16.msra.mxu0 0
      %1188 = vmatprep.mubr.bf16.mxu0 0
      %1189 = vmatmul.mubr.bf16.gmra.mrb[0].mxu0 %v1151
      %v1190 = vpop.f32.mrb[0].mxu0
      %v1191 = vadd.f32 %v1136, %v1190
      %v1192 = vpop.f32.mrb[0].mxu0
      %v1193 = vpop.f32.mrb[0].mxu0
      %v1194 = vadd.f32 %v1136, %v1193
      %v1195 = vpop.f32.mrb[0].mxu0
      %1196 = vmatprep.mubr.bf16.mxu0 0
      %1197 = vmatmul.mubr.bf16.gmra.mrb[0].mxu0 %v1154
      %v1198 = vpop.f32.mrb[0].mxu0
      %v1199 = vadd.f32 %v1136, %v1198
      %v1200 = vpop.f32.mrb[0].mxu0
      %v1201 = vpop.f32.mrb[0].mxu0
      %v1202 = vadd.f32 %v1136, %v1201
      %v1203 = vpop.f32.mrb[0].mxu0
      %1204 = vdwg.mxu0
      %1205 = vst.msk [vmem:[%s324] sm:$0xff] %vm357, %v1191
      %1206 = vst.msk [vmem:[%s324 + $0x8] sm:$0xff] %vm357, %v1194
      %1207 = vst.msk [vmem:[%s324 + $0x10] sm:$0xff] %vm357, %v1199
      %1208 = vst.msk [vmem:[%s324 + $0x18] sm:$0xff] %vm357, %v1202
      %s1209 = smul.u32 4, %s18
      %p1210 = scmp.lt.s32.totalorder %s1209, 7
      %s1211 = scalar_select %p1210, %s1209, 7
      %s1212 = smul.addr %s1211, 8
      %s1213 = scalar_lea.vmem %s7, %s1212
      // Predicated region
      $region49: #{tpu_custom_call.1} parent=47 // pred_check
        %p1214 = pneg %p198
      $region50: #{tpu_custom_call.1} parent=47 // pred_check_branch
        %1216 = sbr.rel (%p1214) target = $region52
      $region51: #{tpu_custom_call.1} parent=47 // pred_region
        %s1217 = smul.u32 4, %s18
      $region52: #{tpu_custom_call.1} parent=47 // pred_fallthru
        _
    $region48: #{tpu_custom_call.1} parent=5 // pred_fallthru
      _
    %p1218 = scmp.le.s32.totalorder 2, %s13
    // Predicated region
    $region53: #{tpu_custom_call.1} parent=5 // pred_check
      %p1219 = pneg %p1218
    $region54: #{tpu_custom_call.1} parent=5 // pred_check_branch
      %1221 = sbr.rel (%p1219) target = $region56
    $region55: #{tpu_custom_call.1} parent=5 // pred_region
      %s1222 = ssub.s32 %s13, 2
      // Predicated region
      $region57: #{tpu_custom_call.1} parent=55 // pred_check
        %p1223 = pneg %p204
      $region58: #{tpu_custom_call.1} parent=55 // pred_check_branch
        %1225 = sbr.rel (%p1223) target = $region60
      $region59: #{tpu_custom_call.1} parent=55 // pred_region
        %s1226 = smul.u32 4, %s19
        %p1227 = scmp.lt.s32.totalorder %s1226, 7
        %s1228 = scalar_select %p1227, %s1226, 7
        %s1229 = smul.addr %s1228, 8
        %s1230 = scalar_lea.vmem %s7, %s1229
      $region60: #{tpu_custom_call.1} parent=55 // pred_fallthru
        _
    $region56: #{tpu_custom_call.1} parent=5 // pred_fallthru
      _
  $region6: #{tpu_custom_call.1} parent=0 // loop_footer
    %s17 = sadd.s32 1, %s13
  $region7: #{tpu_custom_call.1} parent=0 // loop_footer_branch
    %12 = sbr.rel target = $region3
  $region8: #{tpu_custom_call.1} parent=0 // loop_exit
    _

</llo_original>
